<compile_context>
chip_gen: v5e
topology: v5e:2x2
jax: 0.10.0
libtpu: 0.0.40
codegen_flags: <defaults>
</compile_context>

<pallas_src>
import jax
import jax.numpy as jnp
from jax.experimental import pallas as pl
from jax.experimental.pallas import tpu as pltpu

_LANE = 128
_SUBLANE = 8
_MAX_TILE_ROWS = 4096   # (4096,128) f32 block = 2 MiB; 2 inputs double-buffered = 8 MiB


def _round_up(v, m):
    return ((v + m - 1) // m) * m


def _make_kernel(tile_rows, slab_rows, num_tiles):
    """Kernel closure over static tiling params (ragged-tile handling is trace-time)."""
    ragged = (slab_rows % tile_rows) != 0

    def kernel(recon_ref, x_ref, mu_ref, logvar_ref, o_ref, acc_ref):
        i = pl.program_id(0)

        @pl.when(i == 0)
        def _init():
            acc_ref[...] = jnp.zeros_like(acc_ref)

        # Steady state: vld + VALU only.
        diff = recon_ref[...].astype(jnp.float32) - x_ref[...].astype(jnp.float32)
        sq = diff * diff
        if ragged:
            # The last tile extends past the slab; rows beyond slab_rows hold
            # unspecified data, so mask them out (a cheap VPU select).
            row = i * tile_rows + jax.lax.broadcasted_iota(jnp.int32, sq.shape, 0)
            sq = jnp.where(row < slab_rows, sq, 0.0)
        # Elementwise sublane fold into the fixed (8,128) accumulator: pure VALU,
        # no cross-lane reduce in the steady state.
        acc_ref[...] += jnp.sum(sq.reshape(-1, _SUBLANE, _LANE), axis=0)

        @pl.when(i == num_tiles - 1)
        def _finalize():
            mse = jnp.sum(acc_ref[...])          # single-vreg XLU reduce
            mu = mu_ref[...].astype(jnp.float32)
            lv = logvar_ref[...].astype(jnp.float32)
            # KLD = -0.5 * sum(1 + logvar - mu^2 - exp(logvar)); zero padding is
            # exactly neutral (1 + 0 - 0 - exp(0) = 0).
            kld = -0.5 * jnp.sum(1.0 + lv - mu * mu - jnp.exp(lv))
            total = mse + kld
            rr = jax.lax.broadcasted_iota(jnp.int32, (_SUBLANE, _LANE), 0)
            cc = jax.lax.broadcasted_iota(jnp.int32, (_SUBLANE, _LANE), 1)
            o_ref[...] = jnp.where((rr == 0) & (cc == 0), total, 0.0)

    return kernel


def _to_slab(a):
    """Flatten into a lane-dense (8k, 128) slab.  Zero padding (loss-neutral) only
    when the flattened size is not already a multiple of 8*128 (free reshape then)."""
    flat = a.reshape(-1)
    n = flat.shape[0]
    rows = _round_up(max(pl.cdiv(n, _LANE), 1), _SUBLANE)
    pad = rows * _LANE - n
    if pad:
        flat = jnp.pad(flat, (0, pad))
    return flat.reshape(rows, _LANE)


def vae_loss(xhat, x):
    """xhat = (recon_x, mu, logvar); returns scalar sum-MSE + KLD (float32)."""
    recon_x, mu, logvar = xhat

    r_slab = _to_slab(recon_x)
    x_slab = _to_slab(x)
    mu_slab = _to_slab(mu)
    lv_slab = _to_slab(logvar)

    slab_rows = r_slab.shape[0]
    tile_rows = min(_MAX_TILE_ROWS, slab_rows)   # both are multiples of 8
    num_tiles = pl.cdiv(slab_rows, tile_rows)

    n = recon_x.size
    cost = pl.CostEstimate(
        flops=3 * n + 5 * mu.size,
        transcendentals=mu.size,
        bytes_accessed=(n * recon_x.dtype.itemsize + n * x.dtype.itemsize
                        + mu.size * mu.dtype.itemsize
                        + logvar.size * logvar.dtype.itemsize
                        + _SUBLANE * _LANE * 4),
    )

    out = pl.pallas_call(
        _make_kernel(tile_rows, slab_rows, num_tiles),
        out_shape=jax.ShapeDtypeStruct((_SUBLANE, _LANE), jnp.float32),
        grid_spec=pltpu.PrefetchScalarGridSpec(
            num_scalar_prefetch=0,
            grid=(num_tiles,),
            in_specs=[
                pl.BlockSpec((tile_rows, _LANE), lambda i: (i, 0)),   # recon_x
                pl.BlockSpec((tile_rows, _LANE), lambda i: (i, 0)),   # x
                pl.BlockSpec(mu_slab.shape, lambda i: (0, 0)),        # mu (resident)
                pl.BlockSpec(lv_slab.shape, lambda i: (0, 0)),        # logvar (resident)
            ],
            out_specs=pl.BlockSpec((_SUBLANE, _LANE), lambda i: (0, 0)),
            scratch_shapes=[pltpu.VMEM((_SUBLANE, _LANE), jnp.float32)],
        ),
        compiler_params=pltpu.CompilerParams(
            dimension_semantics=("arbitrary",)),
        cost_estimate=cost,
    )(r_slab, x_slab, mu_slab, lv_slab)

    return out[0, 0]


if __name__ == "__main__":
    key = jax.random.PRNGKey(0)
    k1, k2, k3, k4 = jax.random.split(key, 4)

    B, C, H, W = 2, 4, 16, 16
    LATENT = 32

    x = jax.random.normal(k1, (B, C, H, W), jnp.float32)
    recon_x = jax.random.normal(k2, (B, C, H, W), jnp.float32)
    mu = jax.random.normal(k3, (B, LATENT), jnp.float32)
    logvar = 0.1 * jax.random.normal(k4, (B, LATENT), jnp.float32)

    loss = jax.block_until_ready(vae_loss((recon_x, mu, logvar), x))

    # Pure-JAX reference check.
    mse_ref = jnp.sum((recon_x - x) ** 2)
    kld_ref = -0.5 * jnp.sum(1.0 + logvar - mu**2 - jnp.exp(logvar))
    ref = mse_ref + kld_ref
    assert jnp.allclose(loss, ref, rtol=1e-5, atol=1e-4), (loss, ref)

    print("KERNEL_OK")
</pallas_src>

<mosaic_0001>
module attributes {stable_mosaic.version = 11 : i64} {
  func.func @kernel(%arg0: i32, %arg1: memref<16x128xf32, #tpu.memory_space<vmem>>, %arg2: memref<16x128xf32, #tpu.memory_space<vmem>>, %arg3: memref<8x128xf32, #tpu.memory_space<vmem>>, %arg4: memref<8x128xf32, #tpu.memory_space<vmem>>, %arg5: memref<8x128xf32, #tpu.memory_space<vmem>>, %arg6: memref<8x128xf32, #tpu.memory_space<vmem>>) attributes {dimension_semantics = [#tpu.dimension_semantics<arbitrary>], iteration_bounds = array<i64: 1>, scalar_prefetch = 0 : i64, scratch_operands = 1 : i64, tpu.core_type = #tpu.core_type<tc>, window_params = [{transform_indices = @transform_0, window_bounds = array<i64: 16, 128>}, {transform_indices = @transform_1, window_bounds = array<i64: 16, 128>}, {pipeline_mode = #tpu.pipeline_mode<synchronous>, transform_indices = @transform_2, window_bounds = array<i64: 8, 128>}, {pipeline_mode = #tpu.pipeline_mode<synchronous>, transform_indices = @transform_3, window_bounds = array<i64: 8, 128>}, {pipeline_mode = #tpu.pipeline_mode<synchronous>, transform_indices = @transform_4, window_bounds = array<i64: 8, 128>}]} {
    %c0_i32 = arith.constant 0 : i32
    %0 = arith.cmpi eq, %arg0, %c0_i32 : i32
    %1 = arith.extui %0 : i1 to i32
    %c0_i32_0 = arith.constant 0 : i32
    %2 = arith.cmpi ne, %1, %c0_i32_0 : i32
    scf.if %2 {
      %cst_10 = arith.constant 0.000000e+00 : f32
      %15 = vector.broadcast %cst_10 : f32 to vector<8x128xf32>
      %c0_11 = arith.constant 0 : index
      %c0_12 = arith.constant 0 : index
      %16 = vector.load %arg6[%c0_11, %c0_12] : memref<8x128xf32, #tpu.memory_space<vmem>>, vector<8x128xf32>
      tpu.vector_store %arg6[%c0_11, %c0_12], %15 {strides = array<i32>} : memref<8x128xf32, #tpu.memory_space<vmem>>, vector<8x128xf32>,
    } else {
    }
    %c0 = arith.constant 0 : index
    %c0_1 = arith.constant 0 : index
    %3 = vector.load %arg1[%c0, %c0_1] : memref<16x128xf32, #tpu.memory_space<vmem>>, vector<16x128xf32>
    %c0_2 = arith.constant 0 : index
    %c0_3 = arith.constant 0 : index
    %4 = vector.load %arg2[%c0_2, %c0_3] : memref<16x128xf32, #tpu.memory_space<vmem>>, vector<16x128xf32>
    %5 = arith.subf %3, %4 : vector<16x128xf32>
    %6 = arith.mulf %5, %5 : vector<16x128xf32>
    %c0_4 = arith.constant 0 : index
    %c0_5 = arith.constant 0 : index
    %7 = vector.load %arg6[%c0_4, %c0_5] : memref<8x128xf32, #tpu.memory_space<vmem>>, vector<8x128xf32>
    %8 = vector.shape_cast %6 : vector<16x128xf32> to vector<2x8x128xf32>
    %cst = arith.constant dense<0.000000e+00> : vector<8x128xf32>
    %9 = vector.multi_reduction <add>, %8, %cst [0] : vector<2x8x128xf32> to vector<8x128xf32>
    %10 = arith.addf %7, %9 : vector<8x128xf32>
    %c0_6 = arith.constant 0 : index
    %c0_7 = arith.constant 0 : index
    %11 = vector.load %arg6[%c0_6, %c0_7] : memref<8x128xf32, #tpu.memory_space<vmem>>, vector<8x128xf32>
    tpu.vector_store %arg6[%c0_6, %c0_7], %10 {strides = array<i32>} : memref<8x128xf32, #tpu.memory_space<vmem>>, vector<8x128xf32>,
    %c0_i32_8 = arith.constant 0 : i32
    %12 = arith.cmpi eq, %arg0, %c0_i32_8 : i32
    %13 = arith.extui %12 : i1 to i32
    %c0_i32_9 = arith.constant 0 : i32
    %14 = arith.cmpi ne, %13, %c0_i32_9 : i32
    scf.if %14 {
      %c0_10 = arith.constant 0 : index
      %c0_11 = arith.constant 0 : index
      %15 = vector.load %arg6[%c0_10, %c0_11] : memref<8x128xf32, #tpu.memory_space<vmem>>, vector<8x128xf32>
      %16 = vector.shape_cast %15 : vector<8x128xf32> to vector<1x8x128xf32>
      %cst_12 = arith.constant dense<0.000000e+00> : vector<1xf32>
      %17 = vector.multi_reduction <add>, %16, %cst_12 [1, 2] : vector<1x8x128xf32> to vector<1xf32>
      %18 = vector.shape_cast %17 : vector<1xf32> to vector<1x1x1xf32>
      %19 = vector.extract %18[0, 0, 0] : f32 from vector<1x1x1xf32>
      %c0_13 = arith.constant 0 : index
      %c0_14 = arith.constant 0 : index
      %20 = vector.load %arg3[%c0_13, %c0_14] : memref<8x128xf32, #tpu.memory_space<vmem>>, vector<8x128xf32>
      %c0_15 = arith.constant 0 : index
      %c0_16 = arith.constant 0 : index
      %21 = vector.load %arg4[%c0_15, %c0_16] : memref<8x128xf32, #tpu.memory_space<vmem>>, vector<8x128xf32>
      %cst_17 = arith.constant 1.000000e+00 : f32
      %22 = vector.broadcast %cst_17 : f32 to vector<8x128xf32>
      %23 = arith.addf %22, %21 : vector<8x128xf32>
      %24 = arith.mulf %20, %20 : vector<8x128xf32>
      %25 = arith.subf %23, %24 : vector<8x128xf32>
      %26 = math.exp %21 : vector<8x128xf32>
      %27 = arith.subf %25, %26 : vector<8x128xf32>
      %28 = vector.shape_cast %27 : vector<8x128xf32> to vector<1x8x128xf32>
      %cst_18 = arith.constant dense<0.000000e+00> : vector<1xf32>
      %29 = vector.multi_reduction <add>, %28, %cst_18 [1, 2] : vector<1x8x128xf32> to vector<1xf32>
      %30 = vector.shape_cast %29 : vector<1xf32> to vector<1x1x1xf32>
      %31 = vector.extract %30[0, 0, 0] : f32 from vector<1x1x1xf32>
      %cst_19 = arith.constant -5.000000e-01 : f32
      %32 = arith.mulf %cst_19, %31 : f32
      %33 = arith.addf %19, %32 : f32
      %34 = tpu.iota {dimensions = array<i32: 0>} : vector<8x128xi32>
      %35 = tpu.iota {dimensions = array<i32: 1>} : vector<8x128xi32>
      %c0_i32_20 = arith.constant 0 : i32
      %36 = vector.broadcast %c0_i32_20 : i32 to vector<8x128xi32>
      %37 = arith.cmpi eq, %34, %36 : vector<8x128xi32>
      %c0_i32_21 = arith.constant 0 : i32
      %38 = vector.broadcast %c0_i32_21 : i32 to vector<8x128xi32>
      %39 = arith.cmpi eq, %35, %38 : vector<8x128xi32>
      %40 = arith.andi %37, %39 : vector<8x128xi1>
      %cst_22 = arith.constant 0.000000e+00 : f32
      %41 = vector.broadcast %33 : f32 to vector<8x128xf32>
      %42 = vector.broadcast %cst_22 : f32 to vector<8x128xf32>
      %43 = arith.select %40, %41, %42 : vector<8x128xi1>, vector<8x128xf32>
      %c0_23 = arith.constant 0 : index
      %c0_24 = arith.constant 0 : index
      %44 = vector.load %arg5[%c0_23, %c0_24] : memref<8x128xf32, #tpu.memory_space<vmem>>, vector<8x128xf32>
      tpu.vector_store %arg5[%c0_23, %c0_24], %43 {strides = array<i32>} : memref<8x128xf32, #tpu.memory_space<vmem>>, vector<8x128xf32>,
    } else {
    }
    return
  }
  func.func @transform_0(%arg0: i32) -> (i32, i32) {
    %c0_i32 = arith.constant 0 : i32
    %c0_i32_0 = arith.constant 0 : i32
    return %arg0, %c0_i32 : i32, i32
  }
  func.func @transform_1(%arg0: i32) -> (i32, i32) {
    %c0_i32 = arith.constant 0 : i32
    %c0_i32_0 = arith.constant 0 : i32
    return %arg0, %c0_i32 : i32, i32
  }
  func.func @transform_2(%arg0: i32) -> (i32, i32) {
    %c0_i32 = arith.constant 0 : i32
    %c0_i32_0 = arith.constant 0 : i32
    %c0_i32_1 = arith.constant 0 : i32
    return %c0_i32, %c0_i32_0 : i32, i32
  }
  func.func @transform_3(%arg0: i32) -> (i32, i32) {
    %c0_i32 = arith.constant 0 : i32
    %c0_i32_0 = arith.constant 0 : i32
    %c0_i32_1 = arith.constant 0 : i32
    return %c0_i32, %c0_i32_0 : i32, i32
  }
  func.func @transform_4(%arg0: i32) -> (i32, i32) {
    %c0_i32 = arith.constant 0 : i32
    %c0_i32_0 = arith.constant 0 : i32
    %c0_i32_1 = arith.constant 0 : i32
    return %c0_i32, %c0_i32_0 : i32, i32
  }
}

</mosaic_0001>

<llo_original>
// kernel: tpu_custom_call.1
$region0: #{tpu_custom_call.1}
  #allocation0 [shape = 'u32[]', space=smem, size = 0x4, offset = 0x4, fixed_abs, tag = 'smem constant byte address 0x4 - core index']
  #allocation1 [shape = 'u32[72,128]{1,0:T(1,128)}', space=vmem, size = 0x9000, scoped, tag = 'internal scratch']
  #allocation2 [shape = 'f32[8,128]{1,0:T(8,128)}', space=vmem, size = 0x1000, scoped, tag = 'scratch operand']
  %s0 = inlined_call_operand.hbm [shape: f32[16,128], index: 0, kind: input, shape index: {}]
  %s1 = inlined_call_operand.hbm [shape: f32[16,128], index: 1, kind: input, shape index: {}]
  %s2 = inlined_call_operand.hbm [shape: f32[8,128], index: 2, kind: input, shape index: {}]
  %s3 = inlined_call_operand.hbm [shape: f32[8,128], index: 3, kind: input, shape index: {}]
  %s4 = inlined_call_operand.hbm [shape: f32[8,128], index: 4, kind: output, shape index: {}]
  %s5 = sld [smem:[#allocation0]]
  $region50: #{tpu_custom_call.1} parent=0
    _
  %s7 = ssub.s32 1, %s5
  %s8 = scalar_select 0, %s7, %s5
  $region1: #{tpu_custom_call.1} parent=0
    #allocation3 [shape = 'u8[8192]{0}', space=vmem, size = 0x2000, scoped, tag = 'input window, operand 0, single buffered']
    #allocation4 [shape = 's32[1]{0}', space=sflag, size = 0x4, scoped, tag = 'scoped memory for tpu_custom_call.1']
    #allocation5 [shape = 's32[1]{0}', space=sflag, size = 0x4, scoped, tag = 'scoped memory for tpu_custom_call.1']
    #allocation6 [shape = 'u8[8192]{0}', space=vmem, size = 0x2000, scoped, tag = 'input window, operand 1, single buffered']
    #allocation7 [shape = 's32[1]{0}', space=sflag, size = 0x4, scoped, tag = 'scoped memory for tpu_custom_call.1']
    #allocation8 [shape = 'u8[4096]{0}', space=vmem, size = 0x1000, scoped, tag = 'input window, operand 2, single buffered']
    #allocation9 [shape = 'u8[4096]{0}', space=vmem, size = 0x1000, scoped, tag = 'input window, operand 3, single buffered']
    #allocation10 [shape = 's32[1]{0}', space=sflag, size = 0x4, scoped, tag = 'scoped memory for tpu_custom_call.1']
    #allocation11 [shape = 'u8[4096]{0}', space=vmem, size = 0x1000, scoped, tag = 'output window, operand 0, single buffered']
    %9 = vsyncpa [#allocation4], 0
    %10 = vsyncpa [#allocation7], 0
    %11 = vsyncpa [#allocation10], 0
    %12 = vsyncpa [#allocation5], 0
    // Predicated region
    $region2: #{tpu_custom_call.1} parent=1 // pred_check
      _
    $region3: #{tpu_custom_call.1} parent=1 // pred_check_branch
      %14 = sbr.rel (0) target = $region5
    $region4: #{tpu_custom_call.1} parent=1 // pred_region
      %16 = vsyncadd [#allocation4], 0
      %s17 = sshll.u32 %s0, 4
      %s18 = int_to_ptr.hbm [resolvable:$true] %s17
      %s19 = sshll.u32 [#allocation3], 4
      %s20 = int_to_ptr.vmem [resolvable:$true] %s19
      %25 = dma.hbm_to_vmem [thread:$0]  %s18, 256, %s20, [#allocation4], 128, 128, 8
    $region5: #{tpu_custom_call.1} parent=1 // pred_fallthru
      _
    // Predicated region
    $region6: #{tpu_custom_call.1} parent=1 // pred_check
      _
    $region7: #{tpu_custom_call.1} parent=1 // pred_check_branch
      %27 = sbr.rel (0) target = $region9
    $region8: #{tpu_custom_call.1} parent=1 // pred_region
      %29 = vsyncadd [#allocation7], 0
      %s30 = sshll.u32 %s1, 4
      %s31 = int_to_ptr.hbm [resolvable:$true] %s30
      %s32 = sshll.u32 [#allocation6], 4
      %s33 = int_to_ptr.vmem [resolvable:$true] %s32
      %38 = dma.hbm_to_vmem [thread:$0]  %s31, 256, %s33, [#allocation7], 128, 128, 8
    $region9: #{tpu_custom_call.1} parent=1 // pred_fallthru
      _
    // Predicated region
    $region10: #{tpu_custom_call.1} parent=1 // pred_check
      _
    $region11: #{tpu_custom_call.1} parent=1 // pred_check_branch
      %40 = sbr.rel (0) target = $region13
    $region12: #{tpu_custom_call.1} parent=1 // pred_region
      %42 = vsyncadd [#allocation7], 0
      %s44 = sshll.u32 %s2, 4
      %s45 = int_to_ptr.hbm [resolvable:$true] %s44
      %s46 = sshll.u32 [#allocation8], 4
      %s47 = int_to_ptr.vmem [resolvable:$true] %s46
      %49 = dma.hbm_to_vmem [thread:$0]  %s45, 128, %s47, [#allocation7]
    $region13: #{tpu_custom_call.1} parent=1 // pred_fallthru
      _
    // Predicated region
    $region14: #{tpu_custom_call.1} parent=1 // pred_check
      _
    $region15: #{tpu_custom_call.1} parent=1 // pred_check_branch
      %51 = sbr.rel (0) target = $region17
    $region16: #{tpu_custom_call.1} parent=1 // pred_region
      %53 = vsyncadd [#allocation10], 0
      %s55 = sshll.u32 %s3, 4
      %s56 = int_to_ptr.hbm [resolvable:$true] %s55
      %s57 = sshll.u32 [#allocation9], 4
      %s58 = int_to_ptr.vmem [resolvable:$true] %s57
      %60 = dma.hbm_to_vmem [thread:$0]  %s56, 128, %s58, [#allocation10]
    $region17: #{tpu_custom_call.1} parent=1 // pred_fallthru
      _
    // Predicated region
    $region18: #{tpu_custom_call.1} parent=1 // pred_check
      _
    $region19: #{tpu_custom_call.1} parent=1 // pred_check_branch
      %62 = sbr.rel (0) target = $region21
    $region20: #{tpu_custom_call.1} parent=1 // pred_region
      %64 = dma.done [#allocation4], 256
    $region21: #{tpu_custom_call.1} parent=1 // pred_fallthru
      _
    // Predicated region
    $region22: #{tpu_custom_call.1} parent=1 // pred_check
      _
    $region23: #{tpu_custom_call.1} parent=1 // pred_check_branch
      %66 = sbr.rel (0) target = $region25
    $region24: #{tpu_custom_call.1} parent=1 // pred_region
      %68 = dma.done [#allocation7], 256
    $region25: #{tpu_custom_call.1} parent=1 // pred_fallthru
      _
    // Predicated region
    $region26: #{tpu_custom_call.1} parent=1 // pred_check
      _
    $region27: #{tpu_custom_call.1} parent=1 // pred_check_branch
      %70 = sbr.rel (0) target = $region29
    $region28: #{tpu_custom_call.1} parent=1 // pred_region
      %72 = dma.done [#allocation7], 128
    $region29: #{tpu_custom_call.1} parent=1 // pred_fallthru
      _
    // Predicated region
    $region30: #{tpu_custom_call.1} parent=1 // pred_check
      _
    $region31: #{tpu_custom_call.1} parent=1 // pred_check_branch
      %74 = sbr.rel (0) target = $region33
    $region32: #{tpu_custom_call.1} parent=1 // pred_region
      %76 = dma.done [#allocation10], 128
    $region33: #{tpu_custom_call.1} parent=1 // pred_fallthru
      _
    %p77 = scmp.eq.s32.totalorder 0, 0
    // Predicated region
    $region34: #{tpu_custom_call.1} parent=1 // pred_check
      %p78 = pneg %p77
    $region35: #{tpu_custom_call.1} parent=1 // pred_check_branch
      %80 = sbr.rel (%p78) target = $region37
    $region36: #{tpu_custom_call.1} parent=1 // pred_region
      %81 = vst [vmem:[#allocation2] sm:$0xff] 0.0
    $region37: #{tpu_custom_call.1} parent=1 // pred_fallthru
      _
    %v82 = vld [vmem:[#allocation3] sm:$0xff]
    %v83 = vld [vmem:[#allocation3 + $0x8] sm:$0xff]
    %v84 = vld [vmem:[#allocation6] sm:$0xff]
    %v85 = vld [vmem:[#allocation6 + $0x8] sm:$0xff]
    %v86 = vsub.f32 %v82, %v84
    %v87 = vsub.f32 %v83, %v85
    %v88 = vmul.f32 %v86, %v86
    %v89 = vmul.f32 %v87, %v87
    %v90 = vld [vmem:[#allocation2] sm:$0xff]
    %v91 = vadd.f32 %v88, %v89
    %v92 = vadd.f32 %v90, %v91
    %93 = vst [vmem:[#allocation2] sm:$0xff] %v92
    // Predicated region
    $region38: #{tpu_custom_call.1} parent=1 // pred_check
      %p94 = pneg %p77
    $region39: #{tpu_custom_call.1} parent=1 // pred_check_branch
      %96 = sbr.rel (%p94) target = $region41
    $region40: #{tpu_custom_call.1} parent=1 // pred_region
      %v97 = vld [vmem:[#allocation2] sm:$0xff]
      %98 = vadd.xlane.f32.xlu0 %v97
      %v99 = vpop.xlane.xlu0 %98
      %v100 = vrot.slane %v99, 4
      %v101 = vadd.f32 %v99, %v100
      %v102 = vrot.slane %v101, 2
      %v103 = vadd.f32 %v101, %v102
      %v104 = vrot.slane %v103, 1
      %v105 = vadd.f32 %v103, %v104
      %s106 = vtos %v105
      %v107 = vld [vmem:[#allocation8] sm:$0xff]
      %v108 = vld [vmem:[#allocation9] sm:$0xff]
      %v109 = vadd.f32 %v108, 1.0
      %v110 = vmul.f32 %v107, %v107
      %v111 = vsub.f32 %v109, %v110
      %v112 = vmul.f32 %v108, 1.442695
      %v113 = vpow.pop %v112
      %v114 = vsub.f32 %v111, %v113
      %115 = vadd.xlane.f32.xlu0 %v114
      %v116 = vpop.xlane.xlu0 %115
      %v117 = vrot.slane %v116, 4
      %v118 = vadd.f32 %v116, %v117
      %v119 = vrot.slane %v118, 2
      %v120 = vadd.f32 %v118, %v119
      %v121 = vrot.slane %v120, 1
      %v122 = vadd.f32 %v120, %v121
      %s123 = vtos %v122
      %s124 = smul.f32 %s123, -0.5
      %s125 = sadd.f32 %s106, %s124
      %v126 = vlaneseq
      %v127 = vshrl.u32 %v126, 7
      %v128 = vlaneseq
      %v129 = vand.u32 %v128, 127
      %vm130 = vcmp.eq.s32.totalorder %v127, 0
      %vm131 = vcmp.eq.s32.totalorder %v129, 0
      %vm132 = vmand %vm130, %vm131
      %v133 = vstv %s125
      %v134 = vsel %vm132, %v133, 0.0
      %135 = vst [vmem:[#allocation11] sm:$0xff] %v134
    $region41: #{tpu_custom_call.1} parent=1 // pred_fallthru
      _
    // Predicated region
    $region42: #{tpu_custom_call.1} parent=1 // pred_check
      _
    $region43: #{tpu_custom_call.1} parent=1 // pred_check_branch
      %137 = sbr.rel (0) target = $region45
    $region44: #{tpu_custom_call.1} parent=1 // pred_region
      %139 = vsyncadd [#allocation5], 0
      %s141 = sshll.u32 [#allocation11], 4
      %s142 = int_to_ptr.vmem [resolvable:$true] %s141
      %s143 = sshll.u32 %s4, 4
      %s144 = int_to_ptr.hbm [resolvable:$true] %s143
      %146 = dma.vmem_to_hbm [thread:$0]  %s142, 128, %s144, [#allocation5]
    $region45: #{tpu_custom_call.1} parent=1 // pred_fallthru
      _
    // Predicated region
    $region46: #{tpu_custom_call.1} parent=1 // pred_check
      _
    $region47: #{tpu_custom_call.1} parent=1 // pred_check_branch
      %148 = sbr.rel (0) target = $region49
    $region48: #{tpu_custom_call.1} parent=1 // pred_region
      %150 = dma.done [#allocation5], 128
    $region49: #{tpu_custom_call.1} parent=1 // pred_fallthru
      _
    %151 = vsyncpa [#allocation4], 1
    %152 = vsyncpa [#allocation7], 1
    %153 = vsyncpa [#allocation10], 1
    %154 = vsyncpa [#allocation5], 1

</llo_original>
